<compile_context>
chip_gen: v5e
topology: v5e:2x2
jax: 0.10.0
libtpu: 0.0.40
codegen_flags: <defaults>
</compile_context>

<pallas_src>
import functools

import jax
import jax.numpy as jnp
from jax.experimental import pallas as pl
from jax.experimental.pallas import tpu as pltpu

EPS = 1e-5


# ----------------------------------------------------------------------------
# Kernel
# ----------------------------------------------------------------------------
def _bn_fused(h, gamma, beta, *, use_mxu_stats):
    """BatchNorm1d, training-mode (biased variance), as one fused mul+add."""
    B = h.shape[0]
    if use_mxu_stats:
        # Batch reductions on the (otherwise idle) MXU: ones-row @ h.
        ones_row = jnp.full((1, B), 1.0 / B, dtype=jnp.float32)
        mean = jnp.dot(ones_row, h, preferred_element_type=jnp.float32)
        mean_sq = jnp.dot(ones_row, h * h, preferred_element_type=jnp.float32)
    else:
        # Small batch: XLU cross-sublane reduction is fine.
        mean = jnp.mean(h, axis=0, keepdims=True)
        mean_sq = jnp.mean(h * h, axis=0, keepdims=True)
    var = jnp.maximum(mean_sq - mean * mean, 0.0)  # biased variance
    scale = gamma * jax.lax.rsqrt(var + EPS)       # rsqrt -> EUP slot (cheap)
    shift = beta - mean * scale
    return h * scale + shift                       # single mul+add per element


def net_kernel(
    x_ref,
    g0_ref, be0_ref,
    w1_ref, b1_ref,
    g1_ref, be1_ref,
    w2_ref, b2_ref,
    g2_ref, be2_ref,
    w3_ref, b3_ref,
    g3_ref, be3_ref,
    w4_ref, b4_ref,
    w5_ref, b5_ref,
    o_ref,
    *,
    matmul_dtype,
    use_mxu_stats,
):
    x = x_ref[...].astype(jnp.float32)

    def bn_linear_relu(h, g_ref, be_ref, w_ref, b_ref):
        h = _bn_fused(h, g_ref[...], be_ref[...], use_mxu_stats=use_mxu_stats)
        # MXU operands optionally bf16; accumulate + epilogue in f32.
        out = jnp.dot(h.astype(matmul_dtype), w_ref[...],
                      preferred_element_type=jnp.float32) + b_ref[...]
        return jnp.maximum(out, 0.0)

    h = bn_linear_relu(x, g0_ref, be0_ref, w1_ref, b1_ref)   # in  -> 256 (pad of 200)
    h = bn_linear_relu(h, g1_ref, be1_ref, w2_ref, b2_ref)   # 256 -> 128 (pad of 100)
    h = bn_linear_relu(h, g2_ref, be2_ref, w3_ref, b3_ref)   # 128 -> 64
    h = bn_linear_relu(h, g3_ref, be3_ref, w4_ref, b4_ref)   # 64  -> 32

    logits = jnp.dot(h.astype(matmul_dtype), w5_ref[...],
                     preferred_element_type=jnp.float32) + b5_ref[...]
    # Output is (B, 1); lane-dense (1, B) repacking only matters at very large B.
    o_ref[...] = jax.nn.sigmoid(logits)


# ----------------------------------------------------------------------------
# Parameter prep: pad ragged hidden widths to lane multiples, cast W for MXU.
# ----------------------------------------------------------------------------
def _pad_cols(a, new_cols, value=0.0):
    pad = new_cols - a.shape[-1]
    if pad <= 0:
        return a
    return jnp.pad(a, [(0, 0)] * (a.ndim - 1) + [(0, pad)], constant_values=value)


def _pad_rows(a, new_rows, value=0.0):
    pad = new_rows - a.shape[0]
    if pad <= 0:
        return a
    return jnp.pad(a, [(0, pad)] + [(0, 0)] * (a.ndim - 1), constant_values=value)


def prepare_params(params, matmul_dtype=jnp.float32):
    """Pad 200->256 and 100->128 (semantics-neutral) and cast weights for the MXU."""
    (g0, be0, w1, b1, g1, be1, w2, b2, g2, be2,
     w3, b3, g3, be3, w4, b4, w5, b5) = params

    H1, H2 = 256, 128  # padded widths of the 200- and 100-wide layers

    w1 = _pad_cols(w1, H1)
    b1 = _pad_cols(b1, H1)
    g1 = _pad_cols(g1, H1, 1.0)
    be1 = _pad_cols(be1, H1, 0.0)      # beta=0 on padded cols keeps them zero
    w2 = _pad_rows(_pad_cols(w2, H2), H1)
    b2 = _pad_cols(b2, H2)
    g2 = _pad_cols(g2, H2, 1.0)
    be2 = _pad_cols(be2, H2, 0.0)
    w3 = _pad_rows(w3, H2)

    cast = lambda w: w.astype(matmul_dtype)
    return [g0, be0,
            cast(w1), b1,
            g1, be1,
            cast(w2), b2,
            g2, be2,
            cast(w3), b3,
            g3, be3,
            cast(w4), b4,
            cast(w5), b5]


# ----------------------------------------------------------------------------
# Wrapper
# ----------------------------------------------------------------------------
def net_forward(x, params, *, matmul_dtype=jnp.float32):
    """x: (B, input_shape) float32. params: logical (unpadded) parameter list."""
    B, F = x.shape
    prepared = prepare_params(params, matmul_dtype)
    use_mxu_stats = B >= 64  # route BN batch sums through the MXU for bigger B

    # VMEM budget: whole batch resident (no batch grid -- training-mode BN
    # stats are batch-global at every layer). Weights are tiny; activations
    # dominate. Clamp to 64 MiB so the same budget holds on v7x.
    act_bytes = B * (F + 256 + 128 + 64 + 32 + 1) * 4
    w_bytes = sum(int(p.size) * p.dtype.itemsize for p in prepared)
    vmem_limit = int(min(max(3 * (act_bytes + w_bytes) + (8 << 20), 32 << 20),
                         64 << 20))

    kernel = functools.partial(net_kernel,
                               matmul_dtype=matmul_dtype,
                               use_mxu_stats=use_mxu_stats)
    vmem_spec = pl.BlockSpec(memory_space=pltpu.MemorySpace.VMEM)
    args = [x] + prepared
    return pl.pallas_call(
        kernel,
        out_shape=jax.ShapeDtypeStruct((B, 1), jnp.float32),
        in_specs=[vmem_spec] * len(args),
        out_specs=vmem_spec,
        compiler_params=pltpu.CompilerParams(vmem_limit_bytes=vmem_limit),
    )(*args)


# ----------------------------------------------------------------------------
# Synthetic parameters + pure-JAX reference (PyTorch semantics, unpadded)
# ----------------------------------------------------------------------------
def init_params(key, input_shape):
    """Linear weights stored transposed (in, out); biases/BN params as (1, F) rows."""
    sizes = [input_shape, 200, 100, 64, 32, 1]
    keys = jax.random.split(key, 16)
    ki = iter(keys)

    def linear(in_f, out_f):
        bound = 1.0 / jnp.sqrt(jnp.float32(in_f))
        w = jax.random.uniform(next(ki), (in_f, out_f), jnp.float32, -bound, bound)
        b = jax.random.uniform(next(ki), (1, out_f), jnp.float32, -bound, bound)
        return w, b

    def bn(feat):
        return jnp.ones((1, feat), jnp.float32), jnp.zeros((1, feat), jnp.float32)

    g0, be0 = bn(sizes[0])
    w1, b1 = linear(sizes[0], sizes[1])
    g1, be1 = bn(sizes[1])
    w2, b2 = linear(sizes[1], sizes[2])
    g2, be2 = bn(sizes[2])
    w3, b3 = linear(sizes[2], sizes[3])
    g3, be3 = bn(sizes[3])
    w4, b4 = linear(sizes[3], sizes[4])
    w5, b5 = linear(sizes[4], sizes[5])
    return [g0, be0, w1, b1, g1, be1, w2, b2, g2, be2,
            w3, b3, g3, be3, w4, b4, w5, b5]


def reference_forward(x, params):
    """Pure-JAX reference replicating the PyTorch forward (training-mode BN)."""
    (g0, be0, w1, b1, g1, be1, w2, b2, g2, be2,
     w3, b3, g3, be3, w4, b4, w5, b5) = params

    def bn(h, g, b):
        m = jnp.mean(h, axis=0, keepdims=True)
        v = jnp.mean((h - m) ** 2, axis=0, keepdims=True)
        return (h - m) / jnp.sqrt(v + EPS) * g + b

    h = jnp.maximum(bn(x, g0, be0) @ w1 + b1, 0.0)
    h = jnp.maximum(bn(h, g1, be1) @ w2 + b2, 0.0)
    h = jnp.maximum(bn(h, g2, be2) @ w3 + b3, 0.0)
    h = jnp.maximum(bn(h, g3, be3) @ w4 + b4, 0.0)
    return jax.nn.sigmoid(h @ w5 + b5)


if __name__ == "__main__":
    key = jax.random.PRNGKey(0)
    k_x, k_p, k_x2 = jax.random.split(key, 3)

    INPUT_SHAPE = 32
    params = init_params(k_p, INPUT_SHAPE)

    # 1) Small batch, full-f32 matmuls, XLU-based BN stats -- tight check.
    x = jax.random.normal(k_x, (8, INPUT_SHAPE), dtype=jnp.float32)
    out = jax.block_until_ready(net_forward(x, params, matmul_dtype=jnp.float32))
    ref = reference_forward(x, params)
    assert out.shape == (8, 1)
    assert jnp.allclose(out, ref, atol=1e-4, rtol=1e-4)

    # 2) Larger batch: bf16 MXU operands (f32 accumulate) + MXU-based BN stats.
    x2 = jax.random.normal(k_x2, (256, INPUT_SHAPE), dtype=jnp.float32)
    out2 = jax.block_until_ready(net_forward(x2, params, matmul_dtype=jnp.bfloat16))
    ref2 = reference_forward(x2, params)
    assert out2.shape == (256, 1)
    assert float(jnp.max(jnp.abs(out2 - ref2))) < 5e-2  # bf16 matmul tolerance

    print("KERNEL_OK")
</pallas_src>

<mosaic_0001>
module attributes {stable_mosaic.version = 11 : i64} {
  func.func @net_kernel(%arg0: memref<8x32xf32, #tpu.memory_space<vmem>>, %arg1: memref<1x32xf32, #tpu.memory_space<vmem>>, %arg2: memref<1x32xf32, #tpu.memory_space<vmem>>, %arg3: memref<32x256xf32, #tpu.memory_space<vmem>>, %arg4: memref<1x256xf32, #tpu.memory_space<vmem>>, %arg5: memref<1x256xf32, #tpu.memory_space<vmem>>, %arg6: memref<1x256xf32, #tpu.memory_space<vmem>>, %arg7: memref<256x128xf32, #tpu.memory_space<vmem>>, %arg8: memref<1x128xf32, #tpu.memory_space<vmem>>, %arg9: memref<1x128xf32, #tpu.memory_space<vmem>>, %arg10: memref<1x128xf32, #tpu.memory_space<vmem>>, %arg11: memref<128x64xf32, #tpu.memory_space<vmem>>, %arg12: memref<1x64xf32, #tpu.memory_space<vmem>>, %arg13: memref<1x64xf32, #tpu.memory_space<vmem>>, %arg14: memref<1x64xf32, #tpu.memory_space<vmem>>, %arg15: memref<64x32xf32, #tpu.memory_space<vmem>>, %arg16: memref<1x32xf32, #tpu.memory_space<vmem>>, %arg17: memref<32x1xf32, #tpu.memory_space<vmem>>, %arg18: memref<1x1xf32, #tpu.memory_space<vmem>>, %arg19: memref<8x1xf32, #tpu.memory_space<vmem>>) attributes {dimension_semantics = [], scalar_prefetch = 0 : i64, scratch_operands = 0 : i64, tpu.core_type = #tpu.core_type<tc>} {
    %c0 = arith.constant 0 : index
    %c0_0 = arith.constant 0 : index
    %0 = vector.load %arg0[%c0, %c0_0] : memref<8x32xf32, #tpu.memory_space<vmem>>, vector<8x32xf32>
    %c0_1 = arith.constant 0 : index
    %c0_2 = arith.constant 0 : index
    %1 = vector.load %arg1[%c0_1, %c0_2] : memref<1x32xf32, #tpu.memory_space<vmem>>, vector<1x32xf32>
    %c0_3 = arith.constant 0 : index
    %c0_4 = arith.constant 0 : index
    %2 = vector.load %arg2[%c0_3, %c0_4] : memref<1x32xf32, #tpu.memory_space<vmem>>, vector<1x32xf32>
    %cst = arith.constant dense<0.000000e+00> : vector<32xf32>
    %3 = vector.multi_reduction <add>, %0, %cst [0] : vector<8x32xf32> to vector<32xf32>
    %4 = vector.shape_cast %3 : vector<32xf32> to vector<1x32xf32>
    %cst_5 = arith.constant 8.000000e+00 : f32
    %5 = vector.broadcast %cst_5 : f32 to vector<1x32xf32>
    %6 = arith.divf %4, %5 : vector<1x32xf32>
    %7 = arith.mulf %0, %0 : vector<8x32xf32>
    %cst_6 = arith.constant dense<0.000000e+00> : vector<32xf32>
    %8 = vector.multi_reduction <add>, %7, %cst_6 [0] : vector<8x32xf32> to vector<32xf32>
    %9 = vector.shape_cast %8 : vector<32xf32> to vector<1x32xf32>
    %cst_7 = arith.constant 8.000000e+00 : f32
    %10 = vector.broadcast %cst_7 : f32 to vector<1x32xf32>
    %11 = arith.divf %9, %10 : vector<1x32xf32>
    %12 = arith.mulf %6, %6 : vector<1x32xf32>
    %13 = arith.subf %11, %12 : vector<1x32xf32>
    %cst_8 = arith.constant 0.000000e+00 : f32
    %14 = vector.broadcast %cst_8 : f32 to vector<1x32xf32>
    %15 = arith.maximumf %13, %14 : vector<1x32xf32>
    %cst_9 = arith.constant 9.99999974E-6 : f32
    %16 = vector.broadcast %cst_9 : f32 to vector<1x32xf32>
    %17 = arith.addf %15, %16 : vector<1x32xf32>
    %18 = math.rsqrt %17 : vector<1x32xf32>
    %19 = arith.mulf %1, %18 : vector<1x32xf32>
    %20 = arith.mulf %6, %19 : vector<1x32xf32>
    %21 = arith.subf %2, %20 : vector<1x32xf32>
    %22 = vector.broadcast %19 : vector<1x32xf32> to vector<8x32xf32>
    %23 = arith.mulf %0, %22 : vector<8x32xf32>
    %24 = vector.broadcast %21 : vector<1x32xf32> to vector<8x32xf32>
    %25 = arith.addf %23, %24 : vector<8x32xf32>
    %c0_10 = arith.constant 0 : index
    %c0_11 = arith.constant 0 : index
    %26 = vector.load %arg3[%c0_10, %c0_11] : memref<32x256xf32, #tpu.memory_space<vmem>>, vector<32x256xf32>
    %cst_12 = arith.constant dense<0.000000e+00> : vector<8x256xf32>
    %27 = tpu.matmul %25, %26, %cst_12 {dimension_numbers = #tpu.dot_dimension_numbers<[1], [0], [0], [1], [0, 0, 1, 1], [], []>} : vector<8x32xf32>, vector<32x256xf32>, vector<8x256xf32> -> vector<8x256xf32>
    %c0_13 = arith.constant 0 : index
    %c0_14 = arith.constant 0 : index
    %28 = vector.load %arg4[%c0_13, %c0_14] : memref<1x256xf32, #tpu.memory_space<vmem>>, vector<1x256xf32>
    %29 = vector.broadcast %28 : vector<1x256xf32> to vector<8x256xf32>
    %30 = arith.addf %27, %29 : vector<8x256xf32>
    %cst_15 = arith.constant 0.000000e+00 : f32
    %31 = vector.broadcast %cst_15 : f32 to vector<8x256xf32>
    %32 = arith.maximumf %30, %31 : vector<8x256xf32>
    %c0_16 = arith.constant 0 : index
    %c0_17 = arith.constant 0 : index
    %33 = vector.load %arg5[%c0_16, %c0_17] : memref<1x256xf32, #tpu.memory_space<vmem>>, vector<1x256xf32>
    %c0_18 = arith.constant 0 : index
    %c0_19 = arith.constant 0 : index
    %34 = vector.load %arg6[%c0_18, %c0_19] : memref<1x256xf32, #tpu.memory_space<vmem>>, vector<1x256xf32>
    %cst_20 = arith.constant dense<0.000000e+00> : vector<256xf32>
    %35 = vector.multi_reduction <add>, %32, %cst_20 [0] : vector<8x256xf32> to vector<256xf32>
    %36 = vector.shape_cast %35 : vector<256xf32> to vector<1x256xf32>
    %cst_21 = arith.constant 8.000000e+00 : f32
    %37 = vector.broadcast %cst_21 : f32 to vector<1x256xf32>
    %38 = arith.divf %36, %37 : vector<1x256xf32>
    %39 = arith.mulf %32, %32 : vector<8x256xf32>
    %cst_22 = arith.constant dense<0.000000e+00> : vector<256xf32>
    %40 = vector.multi_reduction <add>, %39, %cst_22 [0] : vector<8x256xf32> to vector<256xf32>
    %41 = vector.shape_cast %40 : vector<256xf32> to vector<1x256xf32>
    %cst_23 = arith.constant 8.000000e+00 : f32
    %42 = vector.broadcast %cst_23 : f32 to vector<1x256xf32>
    %43 = arith.divf %41, %42 : vector<1x256xf32>
    %44 = arith.mulf %38, %38 : vector<1x256xf32>
    %45 = arith.subf %43, %44 : vector<1x256xf32>
    %cst_24 = arith.constant 0.000000e+00 : f32
    %46 = vector.broadcast %cst_24 : f32 to vector<1x256xf32>
    %47 = arith.maximumf %45, %46 : vector<1x256xf32>
    %cst_25 = arith.constant 9.99999974E-6 : f32
    %48 = vector.broadcast %cst_25 : f32 to vector<1x256xf32>
    %49 = arith.addf %47, %48 : vector<1x256xf32>
    %50 = math.rsqrt %49 : vector<1x256xf32>
    %51 = arith.mulf %33, %50 : vector<1x256xf32>
    %52 = arith.mulf %38, %51 : vector<1x256xf32>
    %53 = arith.subf %34, %52 : vector<1x256xf32>
    %54 = vector.broadcast %51 : vector<1x256xf32> to vector<8x256xf32>
    %55 = arith.mulf %32, %54 : vector<8x256xf32>
    %56 = vector.broadcast %53 : vector<1x256xf32> to vector<8x256xf32>
    %57 = arith.addf %55, %56 : vector<8x256xf32>
    %c0_26 = arith.constant 0 : index
    %c0_27 = arith.constant 0 : index
    %58 = vector.load %arg7[%c0_26, %c0_27] : memref<256x128xf32, #tpu.memory_space<vmem>>, vector<256x128xf32>
    %cst_28 = arith.constant dense<0.000000e+00> : vector<8x128xf32>
    %59 = tpu.matmul %57, %58, %cst_28 {dimension_numbers = #tpu.dot_dimension_numbers<[1], [0], [0], [1], [0, 0, 1, 1], [], []>} : vector<8x256xf32>, vector<256x128xf32>, vector<8x128xf32> -> vector<8x128xf32>
    %c0_29 = arith.constant 0 : index
    %c0_30 = arith.constant 0 : index
    %60 = vector.load %arg8[%c0_29, %c0_30] : memref<1x128xf32, #tpu.memory_space<vmem>>, vector<1x128xf32>
    %61 = vector.broadcast %60 : vector<1x128xf32> to vector<8x128xf32>
    %62 = arith.addf %59, %61 : vector<8x128xf32>
    %cst_31 = arith.constant 0.000000e+00 : f32
    %63 = vector.broadcast %cst_31 : f32 to vector<8x128xf32>
    %64 = arith.maximumf %62, %63 : vector<8x128xf32>
    %c0_32 = arith.constant 0 : index
    %c0_33 = arith.constant 0 : index
    %65 = vector.load %arg9[%c0_32, %c0_33] : memref<1x128xf32, #tpu.memory_space<vmem>>, vector<1x128xf32>
    %c0_34 = arith.constant 0 : index
    %c0_35 = arith.constant 0 : index
    %66 = vector.load %arg10[%c0_34, %c0_35] : memref<1x128xf32, #tpu.memory_space<vmem>>, vector<1x128xf32>
    %cst_36 = arith.constant dense<0.000000e+00> : vector<128xf32>
    %67 = vector.multi_reduction <add>, %64, %cst_36 [0] : vector<8x128xf32> to vector<128xf32>
    %68 = vector.shape_cast %67 : vector<128xf32> to vector<1x128xf32>
    %cst_37 = arith.constant 8.000000e+00 : f32
    %69 = vector.broadcast %cst_37 : f32 to vector<1x128xf32>
    %70 = arith.divf %68, %69 : vector<1x128xf32>
    %71 = arith.mulf %64, %64 : vector<8x128xf32>
    %cst_38 = arith.constant dense<0.000000e+00> : vector<128xf32>
    %72 = vector.multi_reduction <add>, %71, %cst_38 [0] : vector<8x128xf32> to vector<128xf32>
    %73 = vector.shape_cast %72 : vector<128xf32> to vector<1x128xf32>
    %cst_39 = arith.constant 8.000000e+00 : f32
    %74 = vector.broadcast %cst_39 : f32 to vector<1x128xf32>
    %75 = arith.divf %73, %74 : vector<1x128xf32>
    %76 = arith.mulf %70, %70 : vector<1x128xf32>
    %77 = arith.subf %75, %76 : vector<1x128xf32>
    %cst_40 = arith.constant 0.000000e+00 : f32
    %78 = vector.broadcast %cst_40 : f32 to vector<1x128xf32>
    %79 = arith.maximumf %77, %78 : vector<1x128xf32>
    %cst_41 = arith.constant 9.99999974E-6 : f32
    %80 = vector.broadcast %cst_41 : f32 to vector<1x128xf32>
    %81 = arith.addf %79, %80 : vector<1x128xf32>
    %82 = math.rsqrt %81 : vector<1x128xf32>
    %83 = arith.mulf %65, %82 : vector<1x128xf32>
    %84 = arith.mulf %70, %83 : vector<1x128xf32>
    %85 = arith.subf %66, %84 : vector<1x128xf32>
    %86 = vector.broadcast %83 : vector<1x128xf32> to vector<8x128xf32>
    %87 = arith.mulf %64, %86 : vector<8x128xf32>
    %88 = vector.broadcast %85 : vector<1x128xf32> to vector<8x128xf32>
    %89 = arith.addf %87, %88 : vector<8x128xf32>
    %c0_42 = arith.constant 0 : index
    %c0_43 = arith.constant 0 : index
    %90 = vector.load %arg11[%c0_42, %c0_43] : memref<128x64xf32, #tpu.memory_space<vmem>>, vector<128x64xf32>
    %cst_44 = arith.constant dense<0.000000e+00> : vector<8x64xf32>
    %91 = tpu.matmul %89, %90, %cst_44 {dimension_numbers = #tpu.dot_dimension_numbers<[1], [0], [0], [1], [0, 0, 1, 1], [], []>} : vector<8x128xf32>, vector<128x64xf32>, vector<8x64xf32> -> vector<8x64xf32>
    %c0_45 = arith.constant 0 : index
    %c0_46 = arith.constant 0 : index
    %92 = vector.load %arg12[%c0_45, %c0_46] : memref<1x64xf32, #tpu.memory_space<vmem>>, vector<1x64xf32>
    %93 = vector.broadcast %92 : vector<1x64xf32> to vector<8x64xf32>
    %94 = arith.addf %91, %93 : vector<8x64xf32>
    %cst_47 = arith.constant 0.000000e+00 : f32
    %95 = vector.broadcast %cst_47 : f32 to vector<8x64xf32>
    %96 = arith.maximumf %94, %95 : vector<8x64xf32>
    %c0_48 = arith.constant 0 : index
    %c0_49 = arith.constant 0 : index
    %97 = vector.load %arg13[%c0_48, %c0_49] : memref<1x64xf32, #tpu.memory_space<vmem>>, vector<1x64xf32>
    %c0_50 = arith.constant 0 : index
    %c0_51 = arith.constant 0 : index
    %98 = vector.load %arg14[%c0_50, %c0_51] : memref<1x64xf32, #tpu.memory_space<vmem>>, vector<1x64xf32>
    %cst_52 = arith.constant dense<0.000000e+00> : vector<64xf32>
    %99 = vector.multi_reduction <add>, %96, %cst_52 [0] : vector<8x64xf32> to vector<64xf32>
    %100 = vector.shape_cast %99 : vector<64xf32> to vector<1x64xf32>
    %cst_53 = arith.constant 8.000000e+00 : f32
    %101 = vector.broadcast %cst_53 : f32 to vector<1x64xf32>
    %102 = arith.divf %100, %101 : vector<1x64xf32>
    %103 = arith.mulf %96, %96 : vector<8x64xf32>
    %cst_54 = arith.constant dense<0.000000e+00> : vector<64xf32>
    %104 = vector.multi_reduction <add>, %103, %cst_54 [0] : vector<8x64xf32> to vector<64xf32>
    %105 = vector.shape_cast %104 : vector<64xf32> to vector<1x64xf32>
    %cst_55 = arith.constant 8.000000e+00 : f32
    %106 = vector.broadcast %cst_55 : f32 to vector<1x64xf32>
    %107 = arith.divf %105, %106 : vector<1x64xf32>
    %108 = arith.mulf %102, %102 : vector<1x64xf32>
    %109 = arith.subf %107, %108 : vector<1x64xf32>
    %cst_56 = arith.constant 0.000000e+00 : f32
    %110 = vector.broadcast %cst_56 : f32 to vector<1x64xf32>
    %111 = arith.maximumf %109, %110 : vector<1x64xf32>
    %cst_57 = arith.constant 9.99999974E-6 : f32
    %112 = vector.broadcast %cst_57 : f32 to vector<1x64xf32>
    %113 = arith.addf %111, %112 : vector<1x64xf32>
    %114 = math.rsqrt %113 : vector<1x64xf32>
    %115 = arith.mulf %97, %114 : vector<1x64xf32>
    %116 = arith.mulf %102, %115 : vector<1x64xf32>
    %117 = arith.subf %98, %116 : vector<1x64xf32>
    %118 = vector.broadcast %115 : vector<1x64xf32> to vector<8x64xf32>
    %119 = arith.mulf %96, %118 : vector<8x64xf32>
    %120 = vector.broadcast %117 : vector<1x64xf32> to vector<8x64xf32>
    %121 = arith.addf %119, %120 : vector<8x64xf32>
    %c0_58 = arith.constant 0 : index
    %c0_59 = arith.constant 0 : index
    %122 = vector.load %arg15[%c0_58, %c0_59] : memref<64x32xf32, #tpu.memory_space<vmem>>, vector<64x32xf32>
    %cst_60 = arith.constant dense<0.000000e+00> : vector<8x32xf32>
    %123 = tpu.matmul %121, %122, %cst_60 {dimension_numbers = #tpu.dot_dimension_numbers<[1], [0], [0], [1], [0, 0, 1, 1], [], []>} : vector<8x64xf32>, vector<64x32xf32>, vector<8x32xf32> -> vector<8x32xf32>
    %c0_61 = arith.constant 0 : index
    %c0_62 = arith.constant 0 : index
    %124 = vector.load %arg16[%c0_61, %c0_62] : memref<1x32xf32, #tpu.memory_space<vmem>>, vector<1x32xf32>
    %125 = vector.broadcast %124 : vector<1x32xf32> to vector<8x32xf32>
    %126 = arith.addf %123, %125 : vector<8x32xf32>
    %cst_63 = arith.constant 0.000000e+00 : f32
    %127 = vector.broadcast %cst_63 : f32 to vector<8x32xf32>
    %128 = arith.maximumf %126, %127 : vector<8x32xf32>
    %c0_64 = arith.constant 0 : index
    %c0_65 = arith.constant 0 : index
    %129 = vector.load %arg17[%c0_64, %c0_65] : memref<32x1xf32, #tpu.memory_space<vmem>>, vector<32x1xf32>
    %cst_66 = arith.constant dense<0.000000e+00> : vector<8x1xf32>
    %130 = tpu.matmul %128, %129, %cst_66 {dimension_numbers = #tpu.dot_dimension_numbers<[1], [0], [0], [1], [0, 0, 1, 1], [], []>} : vector<8x32xf32>, vector<32x1xf32>, vector<8x1xf32> -> vector<8x1xf32>
    %c0_67 = arith.constant 0 : index
    %c0_68 = arith.constant 0 : index
    %131 = vector.load %arg18[%c0_67, %c0_68] : memref<1x1xf32, #tpu.memory_space<vmem>>, vector<1x1xf32>
    %132 = vector.broadcast %131 : vector<1x1xf32> to vector<8x1xf32>
    %133 = arith.addf %130, %132 : vector<8x1xf32>
    %134 = arith.negf %133 : vector<8x1xf32>
    %135 = math.exp %134 : vector<8x1xf32>
    %cst_69 = arith.constant 1.000000e+00 : f32
    %136 = vector.broadcast %cst_69 : f32 to vector<8x1xf32>
    %137 = arith.addf %136, %135 : vector<8x1xf32>
    %138 = arith.divf %136, %137 : vector<8x1xf32>
    %c0_70 = arith.constant 0 : index
    %c0_71 = arith.constant 0 : index
    %139 = vector.load %arg19[%c0_70, %c0_71] : memref<8x1xf32, #tpu.memory_space<vmem>>, vector<8x1xf32>
    tpu.vector_store %arg19[%c0_70, %c0_71], %138 {strides = array<i32>} : memref<8x1xf32, #tpu.memory_space<vmem>>, vector<8x1xf32>,
    return
  }
}

</mosaic_0001>

<llo_original>
// kernel: tpu_custom_call.1
$region0: #{tpu_custom_call.1}
  #allocation0 [shape = 'u32[]', space=smem, size = 0x4, offset = 0x4, fixed_abs, tag = 'smem constant byte address 0x4 - core index']
  #allocation1 [shape = 'u32[72,128]{1,0:T(1,128)}', space=vmem, size = 0x9000, scoped, tag = 'internal scratch']
  #allocation2 [shape = 'f32[1,1]{1,0:T(1,128)S(1)}', space=vmem, size = 0x200, scoped, tag = 'scoped memory for tpu_custom_call.1']
  %s0 = inlined_call_operand.vmem [shape: f32[8,32], index: 0, kind: input, shape index: {}]
  %s1 = inlined_call_operand.vmem [shape: f32[1,32], index: 1, kind: input, shape index: {}]
  %s2 = inlined_call_operand.vmem [shape: f32[1,32], index: 2, kind: input, shape index: {}]
  %s3 = inlined_call_operand.vmem [shape: f32[32,256], index: 3, kind: input, shape index: {}]
  %s4 = inlined_call_operand.vmem [shape: f32[1,256], index: 4, kind: input, shape index: {}]
  %s5 = inlined_call_operand.vmem [shape: f32[1,256], index: 5, kind: input, shape index: {}]
  %s6 = inlined_call_operand.vmem [shape: f32[1,256], index: 6, kind: input, shape index: {}]
  %s7 = inlined_call_operand.hbm [shape: f32[256,128], index: 7, kind: input, shape index: {}]
  %s8 = inlined_call_operand.vmem [shape: f32[1,128], index: 8, kind: input, shape index: {}]
  %s9 = inlined_call_operand.vmem [shape: f32[1,128], index: 9, kind: input, shape index: {}]
  %s10 = inlined_call_operand.vmem [shape: f32[1,128], index: 10, kind: input, shape index: {}]
  %s11 = inlined_call_operand.vmem [shape: f32[128,64], index: 11, kind: input, shape index: {}]
  %s12 = inlined_call_operand.vmem [shape: f32[1,64], index: 12, kind: input, shape index: {}]
  %s13 = inlined_call_operand.vmem [shape: f32[1,64], index: 13, kind: input, shape index: {}]
  %s14 = inlined_call_operand.vmem [shape: f32[1,64], index: 14, kind: input, shape index: {}]
  %s15 = inlined_call_operand.vmem [shape: f32[64,32], index: 15, kind: input, shape index: {}]
  %s16 = inlined_call_operand.vmem [shape: f32[1,32], index: 16, kind: input, shape index: {}]
  %s17 = inlined_call_operand.vmem [shape: f32[32,1], index: 17, kind: input, shape index: {}]
  %s18 = inlined_call_operand.<no memory space> [shape: f32[1,1], index: 18, kind: input, shape index: {}]
  %s19 = inlined_call_operand.vmem [shape: f32[8,1], index: 19, kind: output, shape index: {}]
  %s20 = sld [smem:[#allocation0]]
  $region90: #{tpu_custom_call.1} parent=0
    _
  %s22 = ssub.s32 1, %s20
  %s23 = scalar_select 0, %s22, %s20
  %v24 = vstv %s18
  %25 = vst [vmem:[#allocation2] sm:$0x1] %v24
  $region1: #{tpu_custom_call.1} parent=0
    #allocation3 [shape = 'u8[131072]{0}', space=vmem, size = 0x20000, scoped, tag = 'input window, operand 7, single buffered']
    #allocation4 [shape = 's32[1]{0}', space=sflag, size = 0x4, scoped, tag = 'scoped memory for tpu_custom_call.1']
    %26 = vsyncpa [#allocation4], 0
    // Predicated region
    $region2: #{tpu_custom_call.1} parent=1 // pred_check
      _
    $region3: #{tpu_custom_call.1} parent=1 // pred_check_branch
      %28 = sbr.rel (0) target = $region5
    $region4: #{tpu_custom_call.1} parent=1 // pred_region
      _
    $region5: #{tpu_custom_call.1} parent=1 // pred_fallthru
      _
    // Predicated region
    $region6: #{tpu_custom_call.1} parent=1 // pred_check
      _
    $region7: #{tpu_custom_call.1} parent=1 // pred_check_branch
      %30 = sbr.rel (0) target = $region9
    $region8: #{tpu_custom_call.1} parent=1 // pred_region
      _
    $region9: #{tpu_custom_call.1} parent=1 // pred_fallthru
      _
    // Predicated region
    $region10: #{tpu_custom_call.1} parent=1 // pred_check
      _
    $region11: #{tpu_custom_call.1} parent=1 // pred_check_branch
      %32 = sbr.rel (0) target = $region13
    $region12: #{tpu_custom_call.1} parent=1 // pred_region
      _
    $region13: #{tpu_custom_call.1} parent=1 // pred_fallthru
      _
    // Predicated region
    $region14: #{tpu_custom_call.1} parent=1 // pred_check
      _
    $region15: #{tpu_custom_call.1} parent=1 // pred_check_branch
      %34 = sbr.rel (0) target = $region17
    $region16: #{tpu_custom_call.1} parent=1 // pred_region
      _
    $region17: #{tpu_custom_call.1} parent=1 // pred_fallthru
      _
    // Predicated region
    $region18: #{tpu_custom_call.1} parent=1 // pred_check
      _
    $region19: #{tpu_custom_call.1} parent=1 // pred_check_branch
      %36 = sbr.rel (0) target = $region21
    $region20: #{tpu_custom_call.1} parent=1 // pred_region
      _
    $region21: #{tpu_custom_call.1} parent=1 // pred_fallthru
      _
    // Predicated region
    $region22: #{tpu_custom_call.1} parent=1 // pred_check
      _
    $region23: #{tpu_custom_call.1} parent=1 // pred_check_branch
      %38 = sbr.rel (0) target = $region25
    $region24: #{tpu_custom_call.1} parent=1 // pred_region
      _
    $region25: #{tpu_custom_call.1} parent=1 // pred_fallthru
      _
    // Predicated region
    $region26: #{tpu_custom_call.1} parent=1 // pred_check
      _
    $region27: #{tpu_custom_call.1} parent=1 // pred_check_branch
      %40 = sbr.rel (0) target = $region29
    $region28: #{tpu_custom_call.1} parent=1 // pred_region
      _
    $region29: #{tpu_custom_call.1} parent=1 // pred_fallthru
      _
    // Predicated region
    $region30: #{tpu_custom_call.1} parent=1 // pred_check
      _
    $region31: #{tpu_custom_call.1} parent=1 // pred_check_branch
      %42 = sbr.rel (0) target = $region33
    $region32: #{tpu_custom_call.1} parent=1 // pred_region
      %44 = vsyncadd [#allocation4], 0
      %s45 = sshll.u32 %s7, 4
      %s46 = int_to_ptr.hbm [resolvable:$true] %s45
      %s47 = sshll.u32 [#allocation3], 4
      %s48 = int_to_ptr.vmem [resolvable:$true] %s47
      %53 = dma.hbm_to_vmem [thread:$0]  %s46, 4096, %s48, [#allocation4], 128, 128, 8
    $region33: #{tpu_custom_call.1} parent=1 // pred_fallthru
      _
    // Predicated region
    $region34: #{tpu_custom_call.1} parent=1 // pred_check
      _
    $region35: #{tpu_custom_call.1} parent=1 // pred_check_branch
      %55 = sbr.rel (0) target = $region37
    $region36: #{tpu_custom_call.1} parent=1 // pred_region
      _
    $region37: #{tpu_custom_call.1} parent=1 // pred_fallthru
      _
    // Predicated region
    $region38: #{tpu_custom_call.1} parent=1 // pred_check
      _
    $region39: #{tpu_custom_call.1} parent=1 // pred_check_branch
      %57 = sbr.rel (0) target = $region41
    $region40: #{tpu_custom_call.1} parent=1 // pred_region
      _
    $region41: #{tpu_custom_call.1} parent=1 // pred_fallthru
      _
    // Predicated region
    $region42: #{tpu_custom_call.1} parent=1 // pred_check
      _
    $region43: #{tpu_custom_call.1} parent=1 // pred_check_branch
      %59 = sbr.rel (0) target = $region45
    $region44: #{tpu_custom_call.1} parent=1 // pred_region
      _
    $region45: #{tpu_custom_call.1} parent=1 // pred_fallthru
      _
    // Predicated region
    $region46: #{tpu_custom_call.1} parent=1 // pred_check
      _
    $region47: #{tpu_custom_call.1} parent=1 // pred_check_branch
      %61 = sbr.rel (0) target = $region49
    $region48: #{tpu_custom_call.1} parent=1 // pred_region
      _
    $region49: #{tpu_custom_call.1} parent=1 // pred_fallthru
      _
    // Predicated region
    $region50: #{tpu_custom_call.1} parent=1 // pred_check
      _
    $region51: #{tpu_custom_call.1} parent=1 // pred_check_branch
      %63 = sbr.rel (0) target = $region53
    $region52: #{tpu_custom_call.1} parent=1 // pred_region
      _
    $region53: #{tpu_custom_call.1} parent=1 // pred_fallthru
      _
    // Predicated region
    $region54: #{tpu_custom_call.1} parent=1 // pred_check
      _
    $region55: #{tpu_custom_call.1} parent=1 // pred_check_branch
      %65 = sbr.rel (0) target = $region57
    $region56: #{tpu_custom_call.1} parent=1 // pred_region
      _
    $region57: #{tpu_custom_call.1} parent=1 // pred_fallthru
      _
    // Predicated region
    $region58: #{tpu_custom_call.1} parent=1 // pred_check
      _
    $region59: #{tpu_custom_call.1} parent=1 // pred_check_branch
      %67 = sbr.rel (0) target = $region61
    $region60: #{tpu_custom_call.1} parent=1 // pred_region
      _
    $region61: #{tpu_custom_call.1} parent=1 // pred_fallthru
      _
    // Predicated region
    $region62: #{tpu_custom_call.1} parent=1 // pred_check
      _
    $region63: #{tpu_custom_call.1} parent=1 // pred_check_branch
      %69 = sbr.rel (0) target = $region65
    $region64: #{tpu_custom_call.1} parent=1 // pred_region
      _
    $region65: #{tpu_custom_call.1} parent=1 // pred_fallthru
      _
    // Predicated region
    $region66: #{tpu_custom_call.1} parent=1 // pred_check
      _
    $region67: #{tpu_custom_call.1} parent=1 // pred_check_branch
      %71 = sbr.rel (0) target = $region69
    $region68: #{tpu_custom_call.1} parent=1 // pred_region
      _
    $region69: #{tpu_custom_call.1} parent=1 // pred_fallthru
      _
    // Predicated region
    $region70: #{tpu_custom_call.1} parent=1 // pred_check
      _
    $region71: #{tpu_custom_call.1} parent=1 // pred_check_branch
      %73 = sbr.rel (0) target = $region73
    $region72: #{tpu_custom_call.1} parent=1 // pred_region
      _
    $region73: #{tpu_custom_call.1} parent=1 // pred_fallthru
      _
    // Predicated region
    $region74: #{tpu_custom_call.1} parent=1 // pred_check
      _
    $region75: #{tpu_custom_call.1} parent=1 // pred_check_branch
      %75 = sbr.rel (0) target = $region77
    $region76: #{tpu_custom_call.1} parent=1 // pred_region
      _
    $region77: #{tpu_custom_call.1} parent=1 // pred_fallthru
      _
    // Predicated region
    $region78: #{tpu_custom_call.1} parent=1 // pred_check
      _
    $region79: #{tpu_custom_call.1} parent=1 // pred_check_branch
      %77 = sbr.rel (0) target = $region81
    $region80: #{tpu_custom_call.1} parent=1 // pred_region
      %79 = dma.done [#allocation4], 4096
    $region81: #{tpu_custom_call.1} parent=1 // pred_fallthru
      _
    %v80 = vld [vmem:[%s0] sm:$0xff]
    %v81 = vld [vmem:[%s1] sm:$0x1]
    %v82 = vld [vmem:[%s2] sm:$0x1]
    %vm83 = vcmask 261120
    %v84 = vsel %vm83, %v80, 0.0
    %v85 = vrot.slane %v84, 4
    %v86 = vadd.f32 %v84, %v85
    %v87 = vrot.slane %v86, 2
    %v88 = vadd.f32 %v86, %v87
    %v89 = vrot.slane %v88, 1
    %v90 = vadd.f32 %v88, %v89
    %v91 = vrcp.pop 8.0
    %v92 = vmul.f32 8.0, %v91
    %v93 = vsub.f32 1.0, %v92
    %v94 = vmul.f32 %v91, %v93
    %v95 = vadd.f32 %v91, %v94
    %vm96 = vweird.f32 %v91
    %v97 = vsel %vm96, %v91, %v95
    %v98 = vmul.f32 %v90, %v97
    %v99 = vmul.f32 %v80, %v80
    %v100 = vsel %vm83, %v99, 0.0
    %v101 = vrot.slane %v100, 4
    %v102 = vadd.f32 %v100, %v101
    %v103 = vrot.slane %v102, 2
    %v104 = vadd.f32 %v102, %v103
    %v105 = vrot.slane %v104, 1
    %v106 = vadd.f32 %v104, %v105
    %v107 = vmul.f32 %v106, %v97
    %v108 = vmul.f32 %v98, %v98
    %v109 = vsub.f32 %v107, %v108
    %v110 = vmax.f32 %v109, 0.0
    %v111 = vadd.f32 %v110, 1e-05
    %v112 = vrsqrt.pop %v111
    %v113 = vmul.f32 %v112, %v111
    %v114 = vmul.f32 %v113, %v112
    %v115 = vmul.f32 0.5, %v114
    %v116 = vsub.f32 1.5, %v115
    %v117 = vmul.f32 %v112, %v116
    %vm118 = vweird.f32 %v111
    %vm119 = vweird.f32 %v112
    %vm120 = vmor %vm118, %vm119
    %v121 = vsel %vm120, %v112, %v117
    %v122 = vmul.f32 %v81, %v121
    %v123 = vmul.f32 %v98, %v122
    %v124 = vsub.f32 %v82, %v123
    %v126 = vperm.slane %v122, 0
    %v128 = vmul.f32 %v80, %v126
    %v130 = vperm.slane %v124, 0
    %v132 = vadd.f32 %v128, %v130
    %v133 = vld [vmem:[%s3] sm:$0xff]
    %v134 = vld [vmem:[%s3 + $0x8] sm:$0xff]
    %v135 = vld [vmem:[%s3 + $0x10] sm:$0xff]
    %v136 = vld [vmem:[%s3 + $0x18] sm:$0xff]
    %v137 = vld [vmem:[%s3 + $0x20] sm:$0xff]
    %v138 = vld [vmem:[%s3 + $0x28] sm:$0xff]
    %v139 = vld [vmem:[%s3 + $0x30] sm:$0xff]
    %v140 = vld [vmem:[%s3 + $0x38] sm:$0xff]
    %v141 = vld [vmem:[%s4] sm:$0x3]
    %v143 = vperm.slane %v141, 0
    %v144 = vperm.slane %v141, 1
    %v148 = vsel %vm83, %v132, 0
    %150 = vmatpush.msra.mxu0 0.0
    %151 = vmatpush.msra.mxu0 0.0
    %152 = vmatpush.msra.mxu0 0.0
    %153 = vmatpush.msra.mxu0 0.0
    %154 = vmatpush.msra.mxu0 0.0
    %155 = vmatpush.msra.mxu0 0.0
    %156 = vmatpush.msra.mxu0 0.0
    %157 = vmatpush.msra.mxu0 0.0
    %158 = vmatpush.msra.mxu0 0.0
    %159 = vmatpush.msra.mxu0 0.0
    %160 = vmatpush.msra.mxu0 0.0
    %161 = vmatpush.msra.mxu0 0.0
    %162 = vmatpush.msra.mxu0 %v139
    %163 = vmatpush.msra.mxu0 %v137
    %164 = vmatpush.msra.mxu0 %v135
    %165 = vmatpush.msra.mxu0 %v133
    %166 = vmatmul.f32.gmra.mxu0 %v148
    %v167 = vpop.f32.mrf.mxu0
    %v168 = vadd.f32 %v143, %v167
    %169 = vdwg.mxu0
    %170 = vmatpush.msra.mxu0 0.0
    %171 = vmatpush.msra.mxu0 0.0
    %172 = vmatpush.msra.mxu0 0.0
    %173 = vmatpush.msra.mxu0 0.0
    %174 = vmatpush.msra.mxu0 0.0
    %175 = vmatpush.msra.mxu0 0.0
    %176 = vmatpush.msra.mxu0 0.0
    %177 = vmatpush.msra.mxu0 0.0
    %178 = vmatpush.msra.mxu0 0.0
    %179 = vmatpush.msra.mxu0 0.0
    %180 = vmatpush.msra.mxu0 0.0
    %181 = vmatpush.msra.mxu0 0.0
    %182 = vmatpush.msra.mxu0 %v140
    %183 = vmatpush.msra.mxu0 %v138
    %184 = vmatpush.msra.mxu0 %v136
    %185 = vmatpush.msra.mxu0 %v134
    %186 = vmatmul.f32.gmra.mxu0 %v148
    %v187 = vpop.f32.mrf.mxu0
    %v188 = vadd.f32 %v144, %v187
    %189 = vdwg.mxu0
    %v190 = vmax.f32 %v168, 0.0
    %v191 = vmax.f32 %v188, 0.0
    %v192 = vld [vmem:[%s5] sm:$0x3]
    %v193 = vld [vmem:[%s6] sm:$0x3]
    %v194 = vrot.slane %v190, 4
    %v195 = vadd.f32 %v190, %v194
    %v196 = vrot.slane %v195, 2
    %v197 = vadd.f32 %v195, %v196
    %v198 = vrot.slane %v197, 1
    %v199 = vadd.f32 %v197, %v198
    %v200 = vrot.slane %v191, 4
    %v201 = vadd.f32 %v191, %v200
    %v202 = vrot.slane %v201, 2
    %v203 = vadd.f32 %v201, %v202
    %v204 = vrot.slane %v203, 1
    %v205 = vadd.f32 %v203, %v204
    %v206 = vmul.f32 %v199, %v97
    %v207 = vmul.f32 %v205, %v97
    %v208 = vmul.f32 %v190, %v190
    %v209 = vmul.f32 %v191, %v191
    %v210 = vrot.slane %v208, 4
    %v211 = vadd.f32 %v208, %v210
    %v212 = vrot.slane %v211, 2
    %v213 = vadd.f32 %v211, %v212
    %v214 = vrot.slane %v213, 1
    %v215 = vadd.f32 %v213, %v214
    %v216 = vrot.slane %v209, 4
    %v217 = vadd.f32 %v209, %v216
    %v218 = vrot.slane %v217, 2
    %v219 = vadd.f32 %v217, %v218
    %v220 = vrot.slane %v219, 1
    %v221 = vadd.f32 %v219, %v220
    %v222 = vmul.f32 %v215, %v97
    %v223 = vmul.f32 %v221, %v97
    %v224 = vmul.f32 %v206, %v206
    %v225 = vmul.f32 %v207, %v207
    %v226 = vsub.f32 %v222, %v224
    %v227 = vsub.f32 %v223, %v225
    %v228 = vmax.f32 %v226, 0.0
    %v229 = vmax.f32 %v227, 0.0
    %v230 = vadd.f32 %v228, 1e-05
    %v231 = vadd.f32 %v229, 1e-05
    %v232 = vrsqrt.pop %v230
    %v233 = vmul.f32 %v232, %v230
    %v234 = vmul.f32 %v233, %v232
    %v235 = vmul.f32 0.5, %v234
    %v236 = vsub.f32 1.5, %v235
    %v237 = vmul.f32 %v232, %v236
    %vm238 = vweird.f32 %v230
    %vm239 = vweird.f32 %v232
    %vm240 = vmor %vm238, %vm239
    %v241 = vsel %vm240, %v232, %v237
    %v242 = vrsqrt.pop %v231
    %v243 = vmul.f32 %v242, %v231
    %v244 = vmul.f32 %v243, %v242
    %v245 = vmul.f32 0.5, %v244
    %v246 = vsub.f32 1.5, %v245
    %v247 = vmul.f32 %v242, %v246
    %vm248 = vweird.f32 %v231
    %vm249 = vweird.f32 %v242
    %vm250 = vmor %vm248, %vm249
    %v251 = vsel %vm250, %v242, %v247
    %v254 = vrot.slane %v251, 7
    %vm255 = vcmask 1040384
    %v256 = vsel %vm255, %v241, %v254
    %v258 = vmul.f32 %v192, %v256
    %v260 = vperm.slane %v258, 0
    %v261 = vperm.slane %v258, 1
    %v264 = vmul.f32 %v206, %v260
    %v265 = vmul.f32 %v207, %v261
    %v268 = vrot.slane %v265, 7
    %v269 = vsel %vm255, %v264, %v268
    %v271 = vsub.f32 %v193, %v269
    %v272 = vmul.f32 %v190, %v260
    %v273 = vmul.f32 %v191, %v261
    %v275 = vperm.slane %v271, 0
    %v276 = vperm.slane %v271, 1
    %v279 = vadd.f32 %v272, %v275
    %v280 = vadd.f32 %v273, %v276
    %v281 = vld [vmem:[#allocation3] sm:$0xff]
    %v282 = vld [vmem:[#allocation3 + $0x8] sm:$0xff]
    %v283 = vld [vmem:[#allocation3 + $0x10] sm:$0xff]
    %v284 = vld [vmem:[#allocation3 + $0x18] sm:$0xff]
    %v285 = vld [vmem:[#allocation3 + $0x20] sm:$0xff]
    %v286 = vld [vmem:[#allocation3 + $0x28] sm:$0xff]
    %v287 = vld [vmem:[#allocation3 + $0x30] sm:$0xff]
    %v288 = vld [vmem:[#allocation3 + $0x38] sm:$0xff]
    %v289 = vld [vmem:[#allocation3 + $0x40] sm:$0xff]
    %v290 = vld [vmem:[#allocation3 + $0x48] sm:$0xff]
    %v291 = vld [vmem:[#allocation3 + $0x50] sm:$0xff]
    %v292 = vld [vmem:[#allocation3 + $0x58] sm:$0xff]
    %v293 = vld [vmem:[#allocation3 + $0x60] sm:$0xff]
    %v294 = vld [vmem:[#allocation3 + $0x68] sm:$0xff]
    %v295 = vld [vmem:[#allocation3 + $0x70] sm:$0xff]
    %v296 = vld [vmem:[#allocation3 + $0x78] sm:$0xff]
    %v297 = vld [vmem:[#allocation3 + $0x80] sm:$0xff]
    %v298 = vld [vmem:[#allocation3 + $0x88] sm:$0xff]
    %v299 = vld [vmem:[#allocation3 + $0x90] sm:$0xff]
    %v300 = vld [vmem:[#allocation3 + $0x98] sm:$0xff]
    %v301 = vld [vmem:[#allocation3 + $0xa0] sm:$0xff]
    %v302 = vld [vmem:[#allocation3 + $0xa8] sm:$0xff]
    %v303 = vld [vmem:[#allocation3 + $0xb0] sm:$0xff]
    %v304 = vld [vmem:[#allocation3 + $0xb8] sm:$0xff]
    %v305 = vld [vmem:[#allocation3 + $0xc0] sm:$0xff]
    %v306 = vld [vmem:[#allocation3 + $0xc8] sm:$0xff]
    %v307 = vld [vmem:[#allocation3 + $0xd0] sm:$0xff]
    %v308 = vld [vmem:[#allocation3 + $0xd8] sm:$0xff]
    %v309 = vld [vmem:[#allocation3 + $0xe0] sm:$0xff]
    %v310 = vld [vmem:[#allocation3 + $0xe8] sm:$0xff]
    %v311 = vld [vmem:[#allocation3 + $0xf0] sm:$0xff]
    %v312 = vld [vmem:[#allocation3 + $0xf8] sm:$0xff]
    %v313 = vld [vmem:[%s8] sm:$0x1]
    %v315 = vperm.slane %v313, 0
    %317 = vmatpush.msra.mxu0 %v296
    %318 = vmatpush.msra.mxu0 %v295
    %319 = vmatpush.msra.mxu0 %v294
    %320 = vmatpush.msra.mxu0 %v293
    %321 = vmatpush.msra.mxu0 %v292
    %322 = vmatpush.msra.mxu0 %v291
    %323 = vmatpush.msra.mxu0 %v290
    %324 = vmatpush.msra.mxu0 %v289
    %325 = vmatpush.msra.mxu0 %v288
    %326 = vmatpush.msra.mxu0 %v287
    %327 = vmatpush.msra.mxu0 %v286
    %328 = vmatpush.msra.mxu0 %v285
    %329 = vmatpush.msra.mxu0 %v284
    %330 = vmatpush.msra.mxu0 %v283
    %331 = vmatpush.msra.mxu0 %v282
    %332 = vmatpush.msra.mxu0 %v281
    %333 = vmatmul.f32.gmra.mxu0 %v279
    %v334 = vpop.f32.mrf.mxu0
    %v335 = vadd.f32 %v315, %v334
    %336 = vdwg.mxu0
    %337 = vmatpush.msra.mxu0 %v312
    %338 = vmatpush.msra.mxu0 %v311
    %339 = vmatpush.msra.mxu0 %v310
    %340 = vmatpush.msra.mxu0 %v309
    %341 = vmatpush.msra.mxu0 %v308
    %342 = vmatpush.msra.mxu0 %v307
    %343 = vmatpush.msra.mxu0 %v306
    %344 = vmatpush.msra.mxu0 %v305
    %345 = vmatpush.msra.mxu0 %v304
    %346 = vmatpush.msra.mxu0 %v303
    %347 = vmatpush.msra.mxu0 %v302
    %348 = vmatpush.msra.mxu0 %v301
    %349 = vmatpush.msra.mxu0 %v300
    %350 = vmatpush.msra.mxu0 %v299
    %351 = vmatpush.msra.mxu0 %v298
    %352 = vmatpush.msra.mxu0 %v297
    %353 = vmatmul.f32.gmra.mxu0 %v280
    %v354 = vpop.f32.mrf.mxu0
    %v355 = vadd.f32 %v335, %v354
    %356 = vdwg.mxu0
    %v357 = vmax.f32 %v355, 0.0
    %v358 = vld [vmem:[%s9] sm:$0x1]
    %v359 = vld [vmem:[%s10] sm:$0x1]
    %v360 = vrot.slane %v357, 4
    %v361 = vadd.f32 %v357, %v360
    %v362 = vrot.slane %v361, 2
    %v363 = vadd.f32 %v361, %v362
    %v364 = vrot.slane %v363, 1
    %v365 = vadd.f32 %v363, %v364
    %v366 = vmul.f32 %v365, %v97
    %v367 = vmul.f32 %v357, %v357
    %v368 = vrot.slane %v367, 4
    %v369 = vadd.f32 %v367, %v368
    %v370 = vrot.slane %v369, 2
    %v371 = vadd.f32 %v369, %v370
    %v372 = vrot.slane %v371, 1
    %v373 = vadd.f32 %v371, %v372
    %v374 = vmul.f32 %v373, %v97
    %v375 = vmul.f32 %v366, %v366
    %v376 = vsub.f32 %v374, %v375
    %v377 = vmax.f32 %v376, 0.0
    %v378 = vadd.f32 %v377, 1e-05
    %v379 = vrsqrt.pop %v378
    %v380 = vmul.f32 %v379, %v378
    %v381 = vmul.f32 %v380, %v379
    %v382 = vmul.f32 0.5, %v381
    %v383 = vsub.f32 1.5, %v382
    %v384 = vmul.f32 %v379, %v383
    %vm385 = vweird.f32 %v378
    %vm386 = vweird.f32 %v379
    %vm387 = vmor %vm385, %vm386
    %v388 = vsel %vm387, %v379, %v384
    %v389 = vmul.f32 %v358, %v388
    %v390 = vmul.f32 %v366, %v389
    %v391 = vsub.f32 %v359, %v390
    %v393 = vperm.slane %v389, 0
    %v395 = vmul.f32 %v357, %v393
    %v397 = vperm.slane %v391, 0
    %v399 = vadd.f32 %v395, %v397
    %v400 = vld [vmem:[%s11] sm:$0xff]
    %v401 = vld [vmem:[%s11 + $0x8] sm:$0xff]
    %v402 = vld [vmem:[%s11 + $0x10] sm:$0xff]
    %v403 = vld [vmem:[%s11 + $0x18] sm:$0xff]
    %v404 = vld [vmem:[%s11 + $0x20] sm:$0xff]
    %v405 = vld [vmem:[%s11 + $0x28] sm:$0xff]
    %v406 = vld [vmem:[%s11 + $0x30] sm:$0xff]
    %v407 = vld [vmem:[%s11 + $0x38] sm:$0xff]
    %v408 = vld [vmem:[%s11 + $0x40] sm:$0xff]
    %v409 = vld [vmem:[%s11 + $0x48] sm:$0xff]
    %v410 = vld [vmem:[%s11 + $0x50] sm:$0xff]
    %v411 = vld [vmem:[%s11 + $0x58] sm:$0xff]
    %v412 = vld [vmem:[%s11 + $0x60] sm:$0xff]
    %v413 = vld [vmem:[%s11 + $0x68] sm:$0xff]
    %v414 = vld [vmem:[%s11 + $0x70] sm:$0xff]
    %v415 = vld [vmem:[%s11 + $0x78] sm:$0xff]
    %v416 = vld [vmem:[%s12] sm:$0x1]
    %v418 = vperm.slane %v416, 0
    %420 = vmatpush.msra.mxu0 %v415
    %421 = vmatpush.msra.mxu0 %v414
    %422 = vmatpush.msra.mxu0 %v413
    %423 = vmatpush.msra.mxu0 %v412
    %424 = vmatpush.msra.mxu0 %v411
    %425 = vmatpush.msra.mxu0 %v410
    %426 = vmatpush.msra.mxu0 %v409
    %427 = vmatpush.msra.mxu0 %v408
    %428 = vmatpush.msra.mxu0 %v407
    %429 = vmatpush.msra.mxu0 %v406
    %430 = vmatpush.msra.mxu0 %v405
    %431 = vmatpush.msra.mxu0 %v404
    %432 = vmatpush.msra.mxu0 %v403
    %433 = vmatpush.msra.mxu0 %v402
    %434 = vmatpush.msra.mxu0 %v401
    %435 = vmatpush.msra.mxu0 %v400
    %436 = vmatmul.f32.gmra.mxu0 %v399
    %v437 = vpop.f32.mrf.mxu0
    %v438 = vadd.f32 %v418, %v437
    %439 = vdwg.mxu0
    %v440 = vmax.f32 %v438, 0.0
    %v441 = vld [vmem:[%s13] sm:$0x1]
    %v442 = vld [vmem:[%s14] sm:$0x1]
    %vm443 = vcmask 523264
    %v444 = vsel %vm443, %v440, 0.0
    %v445 = vrot.slane %v444, 4
    %v446 = vadd.f32 %v444, %v445
    %v447 = vrot.slane %v446, 2
    %v448 = vadd.f32 %v446, %v447
    %v449 = vrot.slane %v448, 1
    %v450 = vadd.f32 %v448, %v449
    %v451 = vmul.f32 %v450, %v97
    %v452 = vmul.f32 %v440, %v440
    %v453 = vsel %vm443, %v452, 0.0
    %v454 = vrot.slane %v453, 4
    %v455 = vadd.f32 %v453, %v454
    %v456 = vrot.slane %v455, 2
    %v457 = vadd.f32 %v455, %v456
    %v458 = vrot.slane %v457, 1
    %v459 = vadd.f32 %v457, %v458
    %v460 = vmul.f32 %v459, %v97
    %v461 = vmul.f32 %v451, %v451
    %v462 = vsub.f32 %v460, %v461
    %v463 = vmax.f32 %v462, 0.0
    %v464 = vadd.f32 %v463, 1e-05
    %v465 = vrsqrt.pop %v464
    %v466 = vmul.f32 %v465, %v464
    %v467 = vmul.f32 %v466, %v465
    %v468 = vmul.f32 0.5, %v467
    %v469 = vsub.f32 1.5, %v468
    %v470 = vmul.f32 %v465, %v469
    %vm471 = vweird.f32 %v464
    %vm472 = vweird.f32 %v465
    %vm473 = vmor %vm471, %vm472
    %v474 = vsel %vm473, %v465, %v470
    %v475 = vmul.f32 %v441, %v474
    %v476 = vmul.f32 %v451, %v475
    %v477 = vsub.f32 %v442, %v476
    %v479 = vperm.slane %v475, 0
    %v481 = vmul.f32 %v440, %v479
    %v483 = vperm.slane %v477, 0
    %v485 = vadd.f32 %v481, %v483
    %v486 = vld [vmem:[%s15] sm:$0xff]
    %v487 = vld [vmem:[%s15 + $0x8] sm:$0xff]
    %v488 = vld [vmem:[%s15 + $0x10] sm:$0xff]
    %v489 = vld [vmem:[%s15 + $0x18] sm:$0xff]
    %v490 = vld [vmem:[%s15 + $0x20] sm:$0xff]
    %v491 = vld [vmem:[%s15 + $0x28] sm:$0xff]
    %v492 = vld [vmem:[%s15 + $0x30] sm:$0xff]
    %v493 = vld [vmem:[%s15 + $0x38] sm:$0xff]
    %v494 = vld [vmem:[%s16] sm:$0x1]
    %v496 = vperm.slane %v494, 0
    %v499 = vsel %vm443, %v485, 0
    %501 = vmatpush.msra.mxu0 0.0
    %502 = vmatpush.msra.mxu0 0.0
    %503 = vmatpush.msra.mxu0 0.0
    %504 = vmatpush.msra.mxu0 0.0
    %505 = vmatpush.msra.mxu0 0.0
    %506 = vmatpush.msra.mxu0 0.0
    %507 = vmatpush.msra.mxu0 0.0
    %508 = vmatpush.msra.mxu0 0.0
    %509 = vmatpush.msra.mxu0 %v493
    %510 = vmatpush.msra.mxu0 %v492
    %511 = vmatpush.msra.mxu0 %v491
    %512 = vmatpush.msra.mxu0 %v490
    %513 = vmatpush.msra.mxu0 %v489
    %514 = vmatpush.msra.mxu0 %v488
    %515 = vmatpush.msra.mxu0 %v487
    %516 = vmatpush.msra.mxu0 %v486
    %517 = vmatmul.f32.gmra.mxu0 %v499
    %v518 = vpop.f32.mrf.mxu0
    %v519 = vadd.f32 %v496, %v518
    %520 = vdwg.mxu0
    %v521 = vmax.f32 %v519, 0.0
    %v522 = vld [vmem:[%s17] sm:$0xff]
    %v523 = vld [vmem:[%s17 + $0x8] sm:$0xff]
    %v524 = vld [vmem:[%s17 + $0x10] sm:$0xff]
    %v525 = vld [vmem:[%s17 + $0x18] sm:$0xff]
    %v526 = vld [vmem:[#allocation2] sm:$0x1]
    %v528 = vperm.slane %v526, 0
    %v531 = vsel %vm83, %v521, 0
    %533 = vmatpush.msra.mxu0 0.0
    %534 = vmatpush.msra.mxu0 0.0
    %535 = vmatpush.msra.mxu0 0.0
    %536 = vmatpush.msra.mxu0 0.0
    %537 = vmatpush.msra.mxu0 0.0
    %538 = vmatpush.msra.mxu0 0.0
    %539 = vmatpush.msra.mxu0 0.0
    %540 = vmatpush.msra.mxu0 0.0
    %541 = vmatpush.msra.mxu0 0.0
    %542 = vmatpush.msra.mxu0 0.0
    %543 = vmatpush.msra.mxu0 0.0
    %544 = vmatpush.msra.mxu0 0.0
    %545 = vmatpush.msra.mxu0 %v525
    %546 = vmatpush.msra.mxu0 %v524
    %547 = vmatpush.msra.mxu0 %v523
    %548 = vmatpush.msra.mxu0 %v522
    %549 = vmatmul.f32.gmra.mxu0 %v531
    %v550 = vpop.f32.mrf.mxu0
    %v551 = vadd.f32 %v528, %v550
    %552 = vdwg.mxu0
    %v553 = vxor.u32 %v551, 2147483648
    %v554 = vmul.f32 %v553, 1.442695
    %v555 = vpow.pop %v554
    %v556 = vadd.f32 %v555, 1.0
    %v557 = vrcp.pop %v556
    %v558 = vmul.f32 %v556, %v557
    %v559 = vsub.f32 1.0, %v558
    %v560 = vmul.f32 %v557, %v559
    %v561 = vadd.f32 %v557, %v560
    %vm562 = vweird.f32 %v556
    %vm563 = vweird.f32 %v557
    %vm564 = vmor %vm562, %vm563
    %v565 = vsel %vm564, %v557, %v561
    %v566 = vand.u32 2147483647, %v556
    %vm567 = vcmp.eq.f32.partialorder %v566, 8.507059e+37
    %v568 = vand.u32 %v556, 2147483648
    %v569 = vor.u32 1.1754944e-38, %v568
    %v570 = vsel %vm567, %v569, %v565
    %v571 = vmul.f32 1.0, %v570
    %vm572 = vcmask 7168
    %573 = vst.msk [vmem:[%s19] sm:$0xff] %vm572, %v571
    // Predicated region
    $region82: #{tpu_custom_call.1} parent=1 // pred_check
      _
    $region83: #{tpu_custom_call.1} parent=1 // pred_check_branch
      %575 = sbr.rel (0) target = $region85
    $region84: #{tpu_custom_call.1} parent=1 // pred_region
      _
    $region85: #{tpu_custom_call.1} parent=1 // pred_fallthru
      _
    // Predicated region
    $region86: #{tpu_custom_call.1} parent=1 // pred_check
      _
    $region87: #{tpu_custom_call.1} parent=1 // pred_check_branch
      %577 = sbr.rel (0) target = $region89
    $region88: #{tpu_custom_call.1} parent=1 // pred_region
      _
    $region89: #{tpu_custom_call.1} parent=1 // pred_fallthru
      _
    %578 = vsyncpa [#allocation4], 1

</llo_original>
